<compile_context>
chip_gen: v7x
topology: tpu7x:2x2x1
jax: 0.10.0
libtpu: 0.0.40
codegen_flags: <defaults>
</compile_context>

<pallas_src>
import functools

import jax
import jax.numpy as jnp
from jax import lax
from jax.experimental import pallas as pl
from jax.experimental.pallas import tpu as pltpu


def _round_up(x, m):
    return (x + m - 1) // m * m


def _int_power(x, n):
    """x**n for small positive integer n via squaring — pure VPU multiplies."""
    acc, base = None, x
    while n:
        if n & 1:
            acc = base if acc is None else acc * base
        n >>= 1
        if n:
            base = base * base
    return acc


def _accumulate(acc_ref, xp, k, nk, hw, tile_s, mask_lanes):
    """Accumulate row-sums of xp; mask padded lanes only on the last k tile."""
    if mask_lanes:
        @pl.when(k == nk - 1)
        def _():
            col = lax.broadcasted_iota(jnp.int32, xp.shape, 1) + k * tile_s
            masked = jnp.where(col < hw, xp, jnp.float32(0.0))
            acc_ref[...] += jnp.sum(masked, axis=-1, keepdims=True)

        @pl.when(k != nk - 1)
        def _():
            acc_ref[...] += jnp.sum(xp, axis=-1, keepdims=True)
    else:
        acc_ref[...] += jnp.sum(xp, axis=-1, keepdims=True)


def _gem_kernel_runtime_p(p_ref, x_ref, o_ref, acc_ref, *,
                          eps, hw, tile_s, mask_lanes, trans_dtype):
    # p_ref:   (1,) f32 in SMEM          (learnable exponent)
    # x_ref:   (tile_r, tile_s) in VMEM  (one row/spatial tile)
    # o_ref:   (tile_r, 1)               (output block; resident across k)
    # acc_ref: (tile_r, 1) f32 VMEM scratch accumulator
    k = pl.program_id(1)
    nk = pl.num_programs(1)

    @pl.when(k == 0)
    def _():
        acc_ref[...] = jnp.zeros_like(acc_ref)

    p = p_ref[0]
    x = jnp.maximum(x_ref[...].astype(jnp.float32), jnp.float32(eps))  # clamp(min=eps)
    if trans_dtype == jnp.float32:
        xp = jnp.exp(p * jnp.log(x))                     # x^p on EUP (f32)
    else:
        # bf16 exp/log (v6e/v7x EUP): clamp, p-multiply and running sum stay f32.
        xp = jnp.exp(
            (p * jnp.log(x.astype(trans_dtype)).astype(jnp.float32)).astype(trans_dtype)
        ).astype(jnp.float32)

    _accumulate(acc_ref, xp, k, nk, hw, tile_s, mask_lanes)

    @pl.when(k == nk - 1)
    def _():
        mean = acc_ref[...] * jnp.float32(1.0 / hw)      # divide by the TRUE H*W
        o_ref[...] = jnp.exp(jnp.log(mean) / p).astype(o_ref.dtype)


def _gem_kernel_static_p(x_ref, o_ref, acc_ref, *,
                         eps, hw, tile_s, mask_lanes, p_int):
    # Static integer p: x^p is a VPU multiply chain, no per-element EUP work.
    k = pl.program_id(1)
    nk = pl.num_programs(1)

    @pl.when(k == 0)
    def _():
        acc_ref[...] = jnp.zeros_like(acc_ref)

    x = jnp.maximum(x_ref[...].astype(jnp.float32), jnp.float32(eps))
    xp = _int_power(x, p_int)

    _accumulate(acc_ref, xp, k, nk, hw, tile_s, mask_lanes)

    @pl.when(k == nk - 1)
    def _():
        mean = acc_ref[...] * jnp.float32(1.0 / hw)
        # Transcendental only on the tiny (tile_r, 1) finalize column.
        o_ref[...] = jnp.power(mean, jnp.float32(1.0 / p_int)).astype(o_ref.dtype)


def gem_pallas(x, p, eps=1e-6, *, trans_dtype=jnp.float32):
    """GeM forward.  x: (N, C, H, W).

    p: either a jnp array of shape (1,) (learnable/runtime exponent, matches
       the PyTorch Parameter) or a Python int/float.  A small integer p
       (e.g. frozen p=3 at inference) selects the pure-VPU specialization.
    """
    N, C, H, W = x.shape
    R, S = N * C, H * W
    x2 = x.reshape(R, S)

    LANE = 128
    itemsize = jnp.dtype(x.dtype).itemsize
    sublane_mult = {4: 8, 2: 16, 1: 32}.get(itemsize, 8)

    # --- tile sizing -----------------------------------------------------
    # Prefer a single spatial step whenever the lane-padded extent fits.
    tile_s = min(_round_up(S, LANE), 8192)
    # ~8 MiB per input buffer (double-buffered ~16 MiB).
    buf_budget = 8 * 1024 * 1024
    rows_budget = max(
        sublane_mult,
        (buf_budget // (tile_s * itemsize)) // sublane_mult * sublane_mult,
    )
    tile_r = min(_round_up(R, sublane_mult), rows_budget)
    # Keep >= 2 row tiles when R allows, so "parallel" rows shard across both
    # v7x TensorCores (harmless no-op on single-TC v5e/v6e).
    if pl.cdiv(R, tile_r) < 2:
        half = _round_up(pl.cdiv(R, 2), sublane_mult)
        if half < tile_r:
            tile_r = half

    grid = (pl.cdiv(R, tile_r), pl.cdiv(S, tile_s))
    mask_lanes = (S % tile_s) != 0

    # Explicit VMEM limit: resident = double-buffered input + acc + out blocks,
    # plus headroom; capped at 48 MiB so v7x (64 MiB/TC) keeps double-buffering.
    resident_bytes = (2 * tile_r * tile_s * itemsize
                      + tile_r * 4
                      + 2 * tile_r * itemsize)
    vmem_limit = int(min(48 << 20, max(resident_bytes + (8 << 20), 32 << 20)))

    static_p = None
    if isinstance(p, (int, float)) and float(p) == int(p) and 1 <= int(p) <= 8:
        static_p = int(p)

    common = dict(eps=float(eps), hw=S, tile_s=tile_s, mask_lanes=mask_lanes)
    bytes_accessed = x2.size * itemsize + R * itemsize

    if static_p is not None:
        kernel = functools.partial(_gem_kernel_static_p, p_int=static_p, **common)
        cost = pl.CostEstimate(flops=(3 + static_p) * R * S,
                               transcendentals=2 * R,
                               bytes_accessed=bytes_accessed)
        in_specs = [pl.BlockSpec((tile_r, tile_s), lambda i, k: (i, k))]
        args = (x2,)
    else:
        kernel = functools.partial(_gem_kernel_runtime_p,
                                   trans_dtype=trans_dtype, **common)
        cost = pl.CostEstimate(flops=4 * R * S,
                               transcendentals=2 * R * S,     # exp + log per element
                               bytes_accessed=bytes_accessed)
        in_specs = [
            pl.BlockSpec(memory_space=pltpu.SMEM),                # p (scalar param)
            pl.BlockSpec((tile_r, tile_s), lambda i, k: (i, k)),  # x tile
        ]
        p_arr = jnp.asarray(p, dtype=jnp.float32).reshape(1)
        args = (p_arr, x2)

    out = pl.pallas_call(
        kernel,
        out_shape=jax.ShapeDtypeStruct((R, 1), x.dtype),
        grid=grid,
        in_specs=in_specs,
        out_specs=pl.BlockSpec((tile_r, 1), lambda i, k: (i, 0)),
        scratch_shapes=[pltpu.VMEM((tile_r, 1), jnp.float32)],
        compiler_params=pltpu.CompilerParams(
            dimension_semantics=("parallel", "arbitrary"),
            vmem_limit_bytes=vmem_limit,
        ),
        cost_estimate=cost,
    )(*args)

    return out.reshape(N, C, 1, 1)


if __name__ == "__main__":
    eps = 1e-6
    key = jax.random.PRNGKey(0)
    k1, k2 = jax.random.split(key)

    def ref_gem(x, p_val, eps):
        return jnp.power(
            jnp.mean(jnp.power(jnp.maximum(x, eps), p_val),
                     axis=(-2, -1), keepdims=True),
            1.0 / p_val,
        )

    # 1) Learnable/runtime p (matches GeM module: p = Parameter(ones(1) * 3)).
    x1 = jax.random.normal(k1, (2, 4, 16, 16), dtype=jnp.float32)
    p = jnp.ones((1,), dtype=jnp.float32) * 3.0
    out1 = jax.block_until_ready(gem_pallas(x1, p, eps=eps))
    assert out1.shape == (2, 4, 1, 1)
    assert jnp.allclose(out1, ref_gem(x1, p[0], eps), rtol=1e-4, atol=1e-6)

    # 2) Partial-tile / masking path (S=49 not a multiple of 128; R=10 not a
    #    multiple of the row tile) with the static-p (frozen p=3) VPU path.
    x2 = jax.random.normal(k2, (2, 5, 7, 7), dtype=jnp.float32)
    out2 = jax.block_until_ready(gem_pallas(x2, 3, eps=eps))
    assert out2.shape == (2, 5, 1, 1)
    assert jnp.allclose(out2, ref_gem(x2, 3.0, eps), rtol=1e-4, atol=1e-6)

    # 3) Same masked shape through the runtime-p path.
    out3 = jax.block_until_ready(gem_pallas(x2, p, eps=eps))
    assert jnp.allclose(out3, ref_gem(x2, p[0], eps), rtol=1e-4, atol=1e-6)

    print("KERNEL_OK")
</pallas_src>

<mosaic_0001>
module attributes {stable_mosaic.version = 11 : i64} {
  func.func @_gem_kernel_runtime_p(%arg0: i32, %arg1: i32, %arg2: memref<1xf32, #tpu.memory_space<smem>>, %arg3: memref<8x256xf32, #tpu.memory_space<vmem>>, %arg4: memref<8x1xf32, #tpu.memory_space<vmem>>, %arg5: memref<8x1xf32, #tpu.memory_space<vmem>>) attributes {dimension_semantics = [#tpu.dimension_semantics<parallel>, #tpu.dimension_semantics<arbitrary>], iteration_bounds = array<i64: 1, 1>, scalar_prefetch = 0 : i64, scratch_operands = 1 : i64, tpu.core_type = #tpu.core_type<tc>, window_params = [{transform_indices = @transform_0, window_bounds = array<i64: 1>}, {transform_indices = @transform_1, window_bounds = array<i64: 8, 256>}, {transform_indices = @transform_2, window_bounds = array<i64: 8, 1>}]} {
    %c0_i32 = arith.constant 0 : i32
    %0 = arith.cmpi eq, %arg1, %c0_i32 : i32
    %1 = arith.extui %0 : i1 to i32
    %c0_i32_0 = arith.constant 0 : i32
    %2 = arith.cmpi ne, %1, %c0_i32_0 : i32
    scf.if %2 {
      %cst_10 = arith.constant 0.000000e+00 : f32
      %19 = vector.broadcast %cst_10 : f32 to vector<8x1xf32>
      %c0_11 = arith.constant 0 : index
      %c0_12 = arith.constant 0 : index
      %20 = vector.load %arg5[%c0_11, %c0_12] : memref<8x1xf32, #tpu.memory_space<vmem>>, vector<8x1xf32>
      tpu.vector_store %arg5[%c0_11, %c0_12], %19 {strides = array<i32>} : memref<8x1xf32, #tpu.memory_space<vmem>>, vector<8x1xf32>,
    } else {
    }
    %c0 = arith.constant 0 : index
    %3 = memref.load %arg2[%c0] : memref<1xf32, #tpu.memory_space<smem>>
    %c0_1 = arith.constant 0 : index
    %c0_2 = arith.constant 0 : index
    %4 = vector.load %arg3[%c0_1, %c0_2] : memref<8x256xf32, #tpu.memory_space<vmem>>, vector<8x256xf32>
    %cst = arith.constant 9.99999997E-7 : f32
    %5 = vector.broadcast %cst : f32 to vector<8x256xf32>
    %6 = arith.maximumf %4, %5 : vector<8x256xf32>
    %7 = math.log %6 : vector<8x256xf32>
    %8 = vector.broadcast %3 : f32 to vector<8x256xf32>
    %9 = arith.mulf %8, %7 : vector<8x256xf32>
    %10 = math.exp %9 : vector<8x256xf32>
    %c0_3 = arith.constant 0 : index
    %c0_4 = arith.constant 0 : index
    %11 = vector.load %arg5[%c0_3, %c0_4] : memref<8x1xf32, #tpu.memory_space<vmem>>, vector<8x1xf32>
    %cst_5 = arith.constant dense<0.000000e+00> : vector<8xf32>
    %12 = vector.multi_reduction <add>, %10, %cst_5 [1] : vector<8x256xf32> to vector<8xf32>
    %13 = vector.shape_cast %12 : vector<8xf32> to vector<8x1xf32>
    %14 = arith.addf %11, %13 : vector<8x1xf32>
    %c0_6 = arith.constant 0 : index
    %c0_7 = arith.constant 0 : index
    %15 = vector.load %arg5[%c0_6, %c0_7] : memref<8x1xf32, #tpu.memory_space<vmem>>, vector<8x1xf32>
    tpu.vector_store %arg5[%c0_6, %c0_7], %14 {strides = array<i32>} : memref<8x1xf32, #tpu.memory_space<vmem>>, vector<8x1xf32>,
    %c0_i32_8 = arith.constant 0 : i32
    %16 = arith.cmpi eq, %arg1, %c0_i32_8 : i32
    %17 = arith.extui %16 : i1 to i32
    %c0_i32_9 = arith.constant 0 : i32
    %18 = arith.cmpi ne, %17, %c0_i32_9 : i32
    scf.if %18 {
      %c0_10 = arith.constant 0 : index
      %c0_11 = arith.constant 0 : index
      %19 = vector.load %arg5[%c0_10, %c0_11] : memref<8x1xf32, #tpu.memory_space<vmem>>, vector<8x1xf32>
      %cst_12 = arith.constant 3.906250e-03 : f32
      %20 = vector.broadcast %cst_12 : f32 to vector<8x1xf32>
      %21 = arith.mulf %19, %20 : vector<8x1xf32>
      %22 = math.log %21 : vector<8x1xf32>
      %23 = vector.broadcast %3 : f32 to vector<8x1xf32>
      %24 = arith.divf %22, %23 : vector<8x1xf32>
      %25 = math.exp %24 : vector<8x1xf32>
      %c0_13 = arith.constant 0 : index
      %c0_14 = arith.constant 0 : index
      %26 = vector.load %arg4[%c0_13, %c0_14] : memref<8x1xf32, #tpu.memory_space<vmem>>, vector<8x1xf32>
      tpu.vector_store %arg4[%c0_13, %c0_14], %25 {strides = array<i32>} : memref<8x1xf32, #tpu.memory_space<vmem>>, vector<8x1xf32>,
    } else {
    }
    return
  }
  func.func @transform_0(%arg0: i32, %arg1: i32) -> i32 {
    %c0_i32 = arith.constant 0 : i32
    %c0_i32_0 = arith.constant 0 : i32
    return %c0_i32 : i32
  }
  func.func @transform_1(%arg0: i32, %arg1: i32) -> (i32, i32) {
    %c0_i32 = arith.constant 0 : i32
    return %arg0, %arg1 : i32, i32
  }
  func.func @transform_2(%arg0: i32, %arg1: i32) -> (i32, i32) {
    %c0_i32 = arith.constant 0 : i32
    %c0_i32_0 = arith.constant 0 : i32
    return %arg0, %c0_i32 : i32, i32
  }
}

</mosaic_0001>

<llo_original>
// kernel: tpu_custom_call.1
$region0: #{tpu_custom_call.1}
  #allocation0 [shape = 'u32[]', space=smem, size = 0x4, offset = 0x4, fixed_abs, tag = 'smem constant byte address 0x4 - core index']
  #allocation1 [shape = 'u32[144,128]{1,0:T(1,128)}', space=vmem, size = 0x12000, scoped, tag = 'internal scratch']
  #allocation2 [shape = 'f32[8,1]{1,0:T(8,128)}', space=vmem, size = 0x1000, scoped, tag = 'scratch operand']
  #allocation3 [shape = 'f32[1]{0:T(128)S(6)}', space=smem, size = 0x200, scoped, tag = 'scoped memory for tpu_custom_call.1']
  %s0 = inlined_call_operand.<no memory space> [shape: f32[1], index: 0, kind: input, shape index: {}]
  %s1 = inlined_call_operand.hbm [shape: f32[8,256], index: 1, kind: input, shape index: {}]
  %s2 = inlined_call_operand.vmem [shape: f32[8,1], index: 2, kind: output, shape index: {}]
  %s3 = sld [smem:[#allocation0]]
  $region30: #{tpu_custom_call.1} parent=0
    _
  %s5 = ssub.s32 1, %s3
  %s6 = scalar_select 0, %s5, %s3
  %7 = sst [smem:[#allocation3]] %s0
  $region1: #{tpu_custom_call.1} parent=0
    #allocation4 [shape = 'u8[8192]{0}', space=vmem, size = 0x2000, scoped, tag = 'input window, operand 1, single buffered']
    #allocation5 [shape = 's32[1]{0}', space=sflag, size = 0x4, scoped, tag = 'scoped memory for tpu_custom_call.1']
    %8 = vsyncpa [#allocation5], 0
    // Predicated region
    $region2: #{tpu_custom_call.1} parent=1 // pred_check
      _
    $region3: #{tpu_custom_call.1} parent=1 // pred_check_branch
      %10 = sbr.rel (0) target = $region5
    $region4: #{tpu_custom_call.1} parent=1 // pred_region
      _
    $region5: #{tpu_custom_call.1} parent=1 // pred_fallthru
      _
    // Predicated region
    $region6: #{tpu_custom_call.1} parent=1 // pred_check
      _
    $region7: #{tpu_custom_call.1} parent=1 // pred_check_branch
      %12 = sbr.rel (0) target = $region9
    $region8: #{tpu_custom_call.1} parent=1 // pred_region
      %s14 = ssub.s32 256, 256
      %15 = vsyncadd [#allocation5], %s14
      %s17 = sshll.u32 [#allocation4], 4
      %s18 = int_to_ptr.vmem [resolvable:$true] %s17
      %20 = dma.hbm_to_vmem [thread:$0]  %s1, 256, %s18, [#allocation5]
    $region9: #{tpu_custom_call.1} parent=1 // pred_fallthru
      _
    // Predicated region
    $region10: #{tpu_custom_call.1} parent=1 // pred_check
      _
    $region11: #{tpu_custom_call.1} parent=1 // pred_check_branch
      %22 = sbr.rel (0) target = $region13
    $region12: #{tpu_custom_call.1} parent=1 // pred_region
      %23 = dma.done [#allocation5], 256
    $region13: #{tpu_custom_call.1} parent=1 // pred_fallthru
      _
    %p24 = scmp.eq.s32.totalorder 0, 0
    // Predicated region
    $region14: #{tpu_custom_call.1} parent=1 // pred_check
      %p25 = pneg %p24
    $region15: #{tpu_custom_call.1} parent=1 // pred_check_branch
      %27 = sbr.rel (%p25) target = $region17
    $region16: #{tpu_custom_call.1} parent=1 // pred_region
      %vm28 = vcmask 7168
      %29 = vst.msk [vmem:[#allocation2] sm:$0xff] %vm28, 0.0
    $region17: #{tpu_custom_call.1} parent=1 // pred_fallthru
      _
    %s30 = sld [smem:[#allocation3]]
    %v31 = vld [vmem:[#allocation4] sm:$0xff]
    %v32 = vld [vmem:[#allocation4 + $0x8] sm:$0xff]
    %v33 = vmax.f32 %v31, 1e-06
    %v34 = vmax.f32 %v32, 1e-06
    %v35 = vlog2.pop %v33
    %v36 = vmul.f32 %v35, 0.6931472
    %v37 = vlog2.pop %v34
    %v38 = vmul.f32 %v37, 0.6931472
    %v39 = vstv %s30
    %v40 = vmul.f32 %v39, %v36
    %v41 = vmul.f32 %v39, %v38
    %v42 = vmul.f32 %v40, 1.442695
    %v43 = vpow.pop %v42
    %v44 = vmul.f32 %v41, 1.442695
    %v45 = vpow.pop %v44
    %v46 = vld [vmem:[#allocation2] sm:$0xff]
    %v47 = vadd.f32 %v43, %v45
    %48 = vadd.xlane.f32.xlu0 %v47
    %v49 = vpop.xlane.xlu0 %48
    %v50 = vadd.f32 %v46, %v49
    %vm51 = vcmask 7168
    %52 = vst.msk [vmem:[#allocation2] sm:$0xff] %vm51, %v50
    // Predicated region
    $region18: #{tpu_custom_call.1} parent=1 // pred_check
      %p53 = pneg %p24
    $region19: #{tpu_custom_call.1} parent=1 // pred_check_branch
      %55 = sbr.rel (%p53) target = $region21
    $region20: #{tpu_custom_call.1} parent=1 // pred_region
      %v56 = vld [vmem:[#allocation2] sm:$0xff]
      %v57 = vmul.f32 %v56, 0.00390625
      %v58 = vlog2.pop %v57
      %v59 = vmul.f32 %v58, 0.6931472
      %v60 = vrcp.pop %v39
      %v61 = vmul.f32 %v59, %v60
      %v62 = vmul.f32 %v61, 1.442695
      %v63 = vpow.pop %v62
      %64 = vst.msk [vmem:[%s2] sm:$0xff] %vm51, %v63
    $region21: #{tpu_custom_call.1} parent=1 // pred_fallthru
      _
    // Predicated region
    $region22: #{tpu_custom_call.1} parent=1 // pred_check
      _
    $region23: #{tpu_custom_call.1} parent=1 // pred_check_branch
      %66 = sbr.rel (0) target = $region25
    $region24: #{tpu_custom_call.1} parent=1 // pred_region
      _
    $region25: #{tpu_custom_call.1} parent=1 // pred_fallthru
      _
    // Predicated region
    $region26: #{tpu_custom_call.1} parent=1 // pred_check
      _
    $region27: #{tpu_custom_call.1} parent=1 // pred_check_branch
      %68 = sbr.rel (0) target = $region29
    $region28: #{tpu_custom_call.1} parent=1 // pred_region
      _
    $region29: #{tpu_custom_call.1} parent=1 // pred_fallthru
      _
    %69 = vsyncpa [#allocation5], 1

</llo_original>
